<compile_context>
chip_gen: v5e
topology: v5e:2x2
jax: 0.10.0
libtpu: 0.0.40
codegen_flags: <defaults>
</compile_context>

<pallas_src>
import math
import functools

import jax
import jax.numpy as jnp
from jax.experimental import pallas as pl
from jax.experimental.pallas import tpu as pltpu


def _expnorm_kernel(dist_ref, means_ref, neg_betas_ref, out_ref, *,
                    cutoff_lower, cutoff_upper, alpha):
    # dist_ref     : (1, TILE_N)        current tile of distances (lane-dense)
    # means_ref    : (NUM_RBF, 1)       broadcast parameters (loop-invariant)
    # neg_betas_ref: (NUM_RBF, 1)       pre-negated betas
    # out_ref      : (NUM_RBF, TILE_N)  transposed output tile (lane-dense)
    d = dist_ref[...]                                       # (1, TILE_N) f32

    # CosineCutoff(0, cutoff_upper), as instantiated inside ExpNormalSmearing.
    cutoffs = 0.5 * (jnp.cos(d * (math.pi / cutoff_upper)) + 1.0)
    cutoffs = jnp.where(d < cutoff_upper, cutoffs, 0.0)     # (1, TILE_N)

    # exp(alpha * (-dist + cutoff_lower)) -- shared across all RBFs.
    e = jnp.exp(alpha * (cutoff_lower - d))                 # (1, TILE_N)

    diff = e - means_ref[...]                               # (NUM_RBF, TILE_N)
    rbf = jnp.exp(neg_betas_ref[...] * diff * diff)         # (NUM_RBF, TILE_N)

    out_ref[...] = cutoffs * rbf                            # sublane broadcast


def exp_normal_smearing(dist, means, betas, *,
                        cutoff_lower=0.0, cutoff_upper=5.0,
                        tile_n=8192):
    """dist: (N,) float32. Returns (N, num_rbf) float32 (matches PyTorch)."""
    n = dist.shape[0]
    num_rbf = means.shape[0]
    alpha = 5.0 / (cutoff_upper - cutoff_lower)

    # Lane-dense tiling: tile must be a multiple of 128; shrink it for small N
    # so we don't over-pad, and pad N up to a whole number of tiles.
    n_128 = ((n + 127) // 128) * 128
    tile = min(int(tile_n), n_128)
    tile = max(128, (tile // 128) * 128)
    n_padded = pl.cdiv(n, tile) * tile

    dist_f32 = dist.astype(jnp.float32)
    if n_padded != n:
        # Pad with cutoff_upper (cutoff -> 0, finite exp); padded columns are
        # sliced off below.
        dist_f32 = jnp.pad(dist_f32, (0, n_padded - n),
                           constant_values=float(cutoff_upper))

    dist2d = dist_f32.reshape(1, n_padded)                       # (1, Np)
    means2d = means.reshape(num_rbf, 1).astype(jnp.float32)      # (R, 1)
    neg_betas2d = (-betas).reshape(num_rbf, 1).astype(jnp.float32)

    kernel = functools.partial(
        _expnorm_kernel,
        cutoff_lower=float(cutoff_lower),
        cutoff_upper=float(cutoff_upper),
        alpha=float(alpha),
    )

    out_t = pl.pallas_call(
        kernel,
        out_shape=jax.ShapeDtypeStruct((num_rbf, n_padded), jnp.float32),
        grid_spec=pltpu.PrefetchScalarGridSpec(
            num_scalar_prefetch=0,
            grid=(n_padded // tile,),
            in_specs=[
                pl.BlockSpec((1, tile), lambda i: (0, i)),        # dist tile
                pl.BlockSpec((num_rbf, 1), lambda i: (0, 0)),     # means
                pl.BlockSpec((num_rbf, 1), lambda i: (0, 0)),     # -betas
            ],
            out_specs=pl.BlockSpec((num_rbf, tile), lambda i: (0, i)),
        ),
        compiler_params=pltpu.CompilerParams(
            dimension_semantics=("parallel",),      # megacore-shardable on v7x
            vmem_limit_bytes=32 * 1024 * 1024,
        ),
    )(dist2d, means2d, neg_betas2d)

    # Layout plumbing back to the PyTorch-facing (N, num_rbf) view.  XLA fuses
    # the tail slice into the single transpose copy.
    return out_t[:, :n].T


def make_params(cutoff_lower=0.0, cutoff_upper=5.0, num_rbf=50):
    """Deterministic params identical to ExpNormalSmearing._initial_params."""
    start_value = math.exp(-cutoff_upper + cutoff_lower)
    means = jnp.linspace(start_value, 1.0, num_rbf, dtype=jnp.float32)
    betas = jnp.full((num_rbf,),
                     (2.0 / num_rbf * (1.0 - start_value)) ** (-2),
                     dtype=jnp.float32)
    return means, betas


def _reference(dist, means, betas, cutoff_lower=0.0, cutoff_upper=5.0):
    """Plain-JAX reference mirroring the PyTorch forward, for verification."""
    alpha = 5.0 / (cutoff_upper - cutoff_lower)
    d = dist[:, None]
    cut = 0.5 * (jnp.cos(d * math.pi / cutoff_upper) + 1.0)
    cut = cut * (d < cutoff_upper).astype(jnp.float32)
    return cut * jnp.exp(-betas[None, :] *
                         (jnp.exp(alpha * (cutoff_lower - d)) - means[None, :]) ** 2)


if __name__ == "__main__":
    cutoff_lower, cutoff_upper, num_rbf = 0.0, 5.0, 50
    N = 300  # number of edge distances (deliberately not a multiple of 128)

    key = jax.random.PRNGKey(0)
    # distances in [0, cutoff_upper + 1) so some exceed the cutoff
    dist = jax.random.uniform(key, (N,), dtype=jnp.float32,
                              minval=0.0, maxval=cutoff_upper + 1.0)

    means, betas = make_params(cutoff_lower, cutoff_upper, num_rbf)

    out = exp_normal_smearing(dist, means, betas,
                              cutoff_lower=cutoff_lower,
                              cutoff_upper=cutoff_upper)
    out = jax.block_until_ready(out)

    ref = _reference(dist, means, betas, cutoff_lower, cutoff_upper)
    assert out.shape == (N, num_rbf)
    assert jnp.allclose(out, ref, atol=1e-5, rtol=1e-5)

    print("KERNEL_OK")
</pallas_src>

<mosaic_0001>
module attributes {stable_mosaic.version = 11 : i64} {
  func.func @_expnorm_kernel(%arg0: i32, %arg1: memref<1x384xf32, #tpu.memory_space<vmem>>, %arg2: memref<50x1xf32, #tpu.memory_space<vmem>>, %arg3: memref<50x1xf32, #tpu.memory_space<vmem>>, %arg4: memref<50x384xf32, #tpu.memory_space<vmem>>) attributes {dimension_semantics = [#tpu.dimension_semantics<parallel>], iteration_bounds = array<i64: 1>, scalar_prefetch = 0 : i64, scratch_operands = 0 : i64, tpu.core_type = #tpu.core_type<tc>, window_params = [{transform_indices = @transform_0, window_bounds = array<i64: 1, 384>}, {pipeline_mode = #tpu.pipeline_mode<synchronous>, transform_indices = @transform_1, window_bounds = array<i64: 50, 1>}, {pipeline_mode = #tpu.pipeline_mode<synchronous>, transform_indices = @transform_2, window_bounds = array<i64: 50, 1>}, {transform_indices = @transform_3, window_bounds = array<i64: 50, 384>}]} {
    %c0 = arith.constant 0 : index
    %c0_0 = arith.constant 0 : index
    %0 = vector.load %arg1[%c0, %c0_0] : memref<1x384xf32, #tpu.memory_space<vmem>>, vector<1x384xf32>
    %cst = arith.constant 0.628318548 : f32
    %1 = vector.broadcast %cst : f32 to vector<1x384xf32>
    %2 = arith.mulf %0, %1 : vector<1x384xf32>
    %3 = math.cos %2 : vector<1x384xf32>
    %cst_1 = arith.constant 1.000000e+00 : f32
    %4 = vector.broadcast %cst_1 : f32 to vector<1x384xf32>
    %5 = arith.addf %3, %4 : vector<1x384xf32>
    %cst_2 = arith.constant 5.000000e-01 : f32
    %6 = vector.broadcast %cst_2 : f32 to vector<1x384xf32>
    %7 = arith.mulf %6, %5 : vector<1x384xf32>
    %cst_3 = arith.constant 5.000000e+00 : f32
    %8 = vector.broadcast %cst_3 : f32 to vector<1x384xf32>
    %9 = arith.cmpf olt, %0, %8 : vector<1x384xf32>
    %cst_4 = arith.constant 0.000000e+00 : f32
    %10 = vector.broadcast %cst_4 : f32 to vector<1x384xf32>
    %11 = arith.select %9, %7, %10 : vector<1x384xi1>, vector<1x384xf32>
    %cst_5 = arith.constant 0.000000e+00 : f32
    %12 = vector.broadcast %cst_5 : f32 to vector<1x384xf32>
    %13 = arith.subf %12, %0 : vector<1x384xf32>
    %cst_6 = arith.constant 1.000000e+00 : f32
    %14 = vector.broadcast %cst_6 : f32 to vector<1x384xf32>
    %15 = arith.mulf %14, %13 : vector<1x384xf32>
    %16 = math.exp %15 : vector<1x384xf32>
    %c0_7 = arith.constant 0 : index
    %c0_8 = arith.constant 0 : index
    %17 = vector.load %arg2[%c0_7, %c0_8] : memref<50x1xf32, #tpu.memory_space<vmem>>, vector<50x1xf32>
    %18 = vector.broadcast %16 : vector<1x384xf32> to vector<50x384xf32>
    %19 = vector.broadcast %17 : vector<50x1xf32> to vector<50x384xf32>
    %20 = arith.subf %18, %19 : vector<50x384xf32>
    %c0_9 = arith.constant 0 : index
    %c0_10 = arith.constant 0 : index
    %21 = vector.load %arg3[%c0_9, %c0_10] : memref<50x1xf32, #tpu.memory_space<vmem>>, vector<50x1xf32>
    %22 = vector.broadcast %21 : vector<50x1xf32> to vector<50x384xf32>
    %23 = arith.mulf %22, %20 : vector<50x384xf32>
    %24 = arith.mulf %23, %20 : vector<50x384xf32>
    %25 = math.exp %24 : vector<50x384xf32>
    %26 = vector.broadcast %11 : vector<1x384xf32> to vector<50x384xf32>
    %27 = arith.mulf %26, %25 : vector<50x384xf32>
    %c0_11 = arith.constant 0 : index
    %c0_12 = arith.constant 0 : index
    %28 = vector.load %arg4[%c0_11, %c0_12] : memref<50x384xf32, #tpu.memory_space<vmem>>, vector<50x384xf32>
    tpu.vector_store %arg4[%c0_11, %c0_12], %27 {strides = array<i32>} : memref<50x384xf32, #tpu.memory_space<vmem>>, vector<50x384xf32>,
    return
  }
  func.func @transform_0(%arg0: i32) -> (i32, i32) {
    %c0_i32 = arith.constant 0 : i32
    %c0_i32_0 = arith.constant 0 : i32
    return %c0_i32, %arg0 : i32, i32
  }
  func.func @transform_1(%arg0: i32) -> (i32, i32) {
    %c0_i32 = arith.constant 0 : i32
    %c0_i32_0 = arith.constant 0 : i32
    %c0_i32_1 = arith.constant 0 : i32
    return %c0_i32, %c0_i32_0 : i32, i32
  }
  func.func @transform_2(%arg0: i32) -> (i32, i32) {
    %c0_i32 = arith.constant 0 : i32
    %c0_i32_0 = arith.constant 0 : i32
    %c0_i32_1 = arith.constant 0 : i32
    return %c0_i32, %c0_i32_0 : i32, i32
  }
  func.func @transform_3(%arg0: i32) -> (i32, i32) {
    %c0_i32 = arith.constant 0 : i32
    %c0_i32_0 = arith.constant 0 : i32
    return %c0_i32, %arg0 : i32, i32
  }
}

</mosaic_0001>

<llo_original>
// kernel: tpu_custom_call.1
$region0: #{tpu_custom_call.1}
  #allocation0 [shape = 'u32[]', space=smem, size = 0x4, offset = 0x4, fixed_abs, tag = 'smem constant byte address 0x4 - core index']
  #allocation1 [shape = 'u32[72,128]{1,0:T(1,128)}', space=vmem, size = 0x9000, scoped, tag = 'internal scratch']
  %s0 = inlined_call_operand.vmem [shape: f32[1,384], index: 0, kind: input, shape index: {}]
  %s1 = inlined_call_operand.vmem [shape: f32[50,1], index: 1, kind: input, shape index: {}]
  %s2 = inlined_call_operand.vmem [shape: f32[50,1], index: 2, kind: input, shape index: {}]
  %s3 = inlined_call_operand.hbm [shape: f32[50,384], index: 3, kind: output, shape index: {}]
  %s4 = sld [smem:[#allocation0]]
  $region22: #{tpu_custom_call.1} parent=0
    _
  %s6 = ssub.s32 1, %s4
  %s7 = scalar_select 0, %s6, %s4
  $region1: #{tpu_custom_call.1} parent=0
    #allocation2 [shape = 'u8[86016]{0}', space=vmem, size = 0x15000, scoped, tag = 'output window, operand 0, single buffered']
    #allocation3 [shape = 's32[1]{0}', space=sflag, size = 0x4, scoped, tag = 'scoped memory for tpu_custom_call.1']
    %8 = vsyncpa [#allocation3], 0
    // Predicated region
    $region2: #{tpu_custom_call.1} parent=1 // pred_check
      _
    $region3: #{tpu_custom_call.1} parent=1 // pred_check_branch
      %10 = sbr.rel (0) target = $region5
    $region4: #{tpu_custom_call.1} parent=1 // pred_region
      _
    $region5: #{tpu_custom_call.1} parent=1 // pred_fallthru
      _
    // Predicated region
    $region6: #{tpu_custom_call.1} parent=1 // pred_check
      _
    $region7: #{tpu_custom_call.1} parent=1 // pred_check_branch
      %12 = sbr.rel (0) target = $region9
    $region8: #{tpu_custom_call.1} parent=1 // pred_region
      _
    $region9: #{tpu_custom_call.1} parent=1 // pred_fallthru
      _
    // Predicated region
    $region10: #{tpu_custom_call.1} parent=1 // pred_check
      _
    $region11: #{tpu_custom_call.1} parent=1 // pred_check_branch
      %14 = sbr.rel (0) target = $region13
    $region12: #{tpu_custom_call.1} parent=1 // pred_region
      _
    $region13: #{tpu_custom_call.1} parent=1 // pred_fallthru
      _
    %v15 = vld [vmem:[%s0] sm:$0x7]
    %v16 = vmul.f32 %v15, 0.62831855
    %v17 = vand.u32 2147483647, %v16
    %vm18 = vcmp.le.f32.partialorder %v17, 0.7853982
    %vm19 = vcmp.lt.s32.totalorder %v16, 0
    %v20 = vand.u32 %v16, 2139095040
    %v21 = vshrl.u32 %v20, 23
    %v22 = vsub.s32 %v21, 127
    %v23 = vand.u32 2147483647, %v16
    %v24 = vand.u32 %v23, 8388607
    %v25 = vor.u32 %v24, 8388608
    %v26 = vsub.s32 0, %v25
    %v27 = vadd.s32 %v22, 1
    %vm28 = vcmp.gt.s32.totalorder %v27, 0
    %v29 = vsel %vm28, %v27, 0
    %v30 = vshrl.u32 %v29, 5
    %v31 = vand.u32 %v29, 31
    %v32 = vsub.s32 32, %v31
    %v33 = vshrl.u32 683565275, %v32
    %v34 = vshll.u32 683565275, %v31
    %v35 = vshrl.u32 2475754826, %v32
    %v36 = vor.u32 %v34, %v35
    %v37 = vshll.u32 2475754826, %v31
    %v38 = vshrl.u32 2131351028, %v32
    %v39 = vor.u32 %v37, %v38
    %v40 = vshll.u32 2131351028, %v31
    %v41 = vshrl.u32 2102212464, %v32
    %v42 = vor.u32 %v40, %v41
    %v43 = vshll.u32 2102212464, %v31
    %v44 = vshrl.u32 920167782, %v32
    %v45 = vor.u32 %v43, %v44
    %v46 = vshll.u32 920167782, %v31
    %v47 = vshrl.u32 1326507024, %v32
    %v48 = vor.u32 %v46, %v47
    %vm49 = vcmp.lt.s32.totalorder %v30, 1
    %vm50 = vcmp.lt.s32.totalorder %v30, 2
    %vm51 = vcmp.lt.s32.totalorder %v30, 3
    %vm52 = vcmp.lt.s32.totalorder %v30, 4
    %v53 = vsel %vm49, %v33, %v36
    %v54 = vsel %vm52, %v42, 2102212464
    %v55 = vsel %vm51, %v39, %v54
    %v56 = vsel %vm50, %v53, %v55
    %v57 = vsel %vm49, %v36, %v39
    %v58 = vsel %vm52, %v45, 920167782
    %v59 = vsel %vm51, %v42, %v58
    %v60 = vsel %vm50, %v57, %v59
    %v61 = vsel %vm49, %v39, %v42
    %v62 = vsel %vm52, %v48, 1326507024
    %v63 = vsel %vm51, %v45, %v62
    %v64 = vsel %vm50, %v61, %v63
    %v65 = vshll.u32 %v25, 8
    %v66 = vand.u32 %v65, 65535
    %v67 = vshrl.u32 %v65, 16
    %v68 = vand.u32 %v64, 65535
    %v69 = vshrl.u32 %v64, 16
    %v70 = vmul.u32 %v66, %v68
    %v71 = vmul.u32 %v66, %v69
    %v72 = vmul.u32 %v67, %v68
    %v73 = vmul.u32 %v67, %v69
    %v74 = vshll.u32 %v71, 16
    %v75 = vshrl.u32 %v71, 16
    %v76 = vshll.u32 %v72, 16
    %v77 = vshrl.u32 %v72, 16
    %vm78 = vc.u32 %v70, %v74
    %v79 = vsel %vm78, 1, 0
    %v80 = vadd.s32 %v70, %v74
    %v81 = vadd.s32 %v73, %v79
    %vm82 = vc.u32 %v80, %v76
    %v83 = vsel %vm82, 1, 0
    %v84 = vadd.s32 %v80, %v76
    %v85 = vadd.s32 %v81, %v83
    %v86 = vadd.s32 %v85, %v75
    %v87 = vadd.s32 %v86, %v77
    %v88 = vand.u32 %v65, 65535
    %v89 = vshrl.u32 %v65, 16
    %v90 = vand.u32 %v60, 65535
    %v91 = vshrl.u32 %v60, 16
    %v92 = vmul.u32 %v88, %v90
    %v93 = vmul.u32 %v88, %v91
    %v94 = vmul.u32 %v89, %v90
    %v95 = vmul.u32 %v89, %v91
    %v96 = vshll.u32 %v93, 16
    %v97 = vshrl.u32 %v93, 16
    %v98 = vshll.u32 %v94, 16
    %v99 = vshrl.u32 %v94, 16
    %vm100 = vc.u32 %v92, %v96
    %v101 = vsel %vm100, 1, 0
    %v102 = vadd.s32 %v92, %v96
    %v103 = vadd.s32 %v95, %v101
    %vm104 = vc.u32 %v102, %v98
    %v105 = vsel %vm104, 1, 0
    %v106 = vadd.s32 %v102, %v98
    %v107 = vadd.s32 %v103, %v105
    %v108 = vadd.s32 %v107, %v97
    %v109 = vadd.s32 %v108, %v99
    %v110 = vmul.u32 %v65, %v56
    %v111 = vadd.s32 %v87, %v106
    %vm112 = vc.u32 %v87, %v106
    %v113 = vadd.s32 %v109, 1
    %v114 = vsel %vm112, %v113, %v109
    %v115 = vadd.s32 %v110, %v114
    %v116 = vadd.s32 %v115, 536870912
    %v117 = vshrl.u32 %v116, 30
    %v118 = vshll.u32 %v117, 30
    %v119 = vsub.s32 %v115, %v118
    %vm120 = vcmp.lt.s32.totalorder %v119, 0
    %v121 = vsub.s32 0, %v119
    %v122 = vsel %vm120, %v121, %v119
    %v123 = vclz %v122
    %v124 = vsub.s32 %v123, 2
    %vm125 = vcmp.gt.s32.totalorder 0, %v124
    %v126 = vsel %vm125, 0, %v124
    %v127 = vsub.s32 32, %v126
    %v128 = vshll.u32 %v119, %v126
    %v129 = vshrl.u32 %v111, %v127
    %v130 = vor.u32 %v128, %v129
    %v131 = vsub.s32 4294967266, %v126
    %v132 = vadd.s32 %v131, 127
    %v133 = vshll.u32 %v132, 23
    %v134 = vor.u32 4788187, %v133
    %v135 = vand.u32 2147483647, %v134
    %v137 = vcvt.s32.f32 %v130
    %v138 = vmul.f32 %v137, %v135
    %v139 = vxor.u32 %v138, 2147483648
    %v140 = vsel %vm19, %v139, %v138
    %v141 = vsub.s32 4, %v117
    %v142 = vsel %vm19, %v141, %v117
    %v143 = vsel %vm18, %v16, %v140
    %v144 = vsel %vm18, 0, %v142
    %v145 = vmul.f32 %v143, %v143
    %v146 = vmul.f32 %v145, -0.001358992
    %v147 = vadd.f32 %v146, 0.041655596
    %v148 = vmul.f32 %v145, %v147
    %v149 = vadd.f32 %v148, -0.4999988
    %v150 = vmul.f32 %v145, %v149
    %v151 = vadd.f32 1.0, %v150
    %v152 = vmul.f32 %v143, %v143
    %v153 = vmul.f32 %v152, -0.00019511016
    %v154 = vadd.f32 %v153, 0.008332121
    %v155 = vmul.f32 %v152, %v154
    %v156 = vadd.f32 %v155, -0.16666654
    %v157 = vmul.f32 %v152, %v156
    %v158 = vadd.f32 %v157, 1.0
    %v159 = vmul.f32 %v158, %v143
    %vm160 = vweird.f32 %v16
    %v161 = vand.u32 %v144, 3
    %vm162 = vcmp.lt.s32.totalorder %v161, 2
    %vm163 = vcmp.eq.s32.totalorder %v161, 0
    %v164 = vxor.u32 %v159, 2147483648
    %v165 = vsel %vm163, %v151, %v164
    %vm166 = vcmp.eq.s32.totalorder %v161, 2
    %v167 = vxor.u32 %v151, 2147483648
    %v168 = vsel %vm166, %v167, %v159
    %v169 = vsel %vm162, %v165, %v168
    %v170 = vsel %vm160, nan, %v169
    %v171 = vadd.f32 %v170, 1.0
    %v172 = vmul.f32 %v171, 0.5
    %vm173 = vcmp.lt.f32.partialorder %v15, 5.0
    %v174 = vsel %vm173, %v172, 0.0
    %v175 = vsub.f32 0.0, %v15
    %v176 = vmul.f32 %v175, 1.442695
    %v177 = vpow.pop %v176
    %v178 = vld [vmem:[%s1] sm:$0xff]
    %v179 = vld [vmem:[%s1 + $0x8] sm:$0xff]
    %v180 = vld [vmem:[%s1 + $0x10] sm:$0xff]
    %v181 = vld [vmem:[%s1 + $0x18] sm:$0xff]
    %v182 = vld [vmem:[%s1 + $0x20] sm:$0xff]
    %v183 = vld [vmem:[%s1 + $0x28] sm:$0xff]
    %v184 = vld [vmem:[%s1 + $0x30] sm:$0x3]
    %v186 = vperm.slane %v177, 0
    %v187 = vperm.slane %v177, 1
    %v188 = vperm.slane %v177, 2
    %193 = vset.pattern.permute.xlu0 0
    %194 = vperm.xlu0 %193, %v178
    %v195 = vpop.permute.xlu0 %194
    %198 = vset.pattern.permute.xlu0 0
    %199 = vperm.xlu0 %198, %v179
    %v200 = vpop.permute.xlu0 %199
    %203 = vset.pattern.permute.xlu0 0
    %204 = vperm.xlu0 %203, %v180
    %v205 = vpop.permute.xlu0 %204
    %208 = vset.pattern.permute.xlu0 0
    %209 = vperm.xlu0 %208, %v181
    %v210 = vpop.permute.xlu0 %209
    %213 = vset.pattern.permute.xlu0 0
    %214 = vperm.xlu0 %213, %v182
    %v215 = vpop.permute.xlu0 %214
    %218 = vset.pattern.permute.xlu0 0
    %219 = vperm.xlu0 %218, %v183
    %v220 = vpop.permute.xlu0 %219
    %223 = vset.pattern.permute.xlu0 0
    %224 = vperm.xlu0 %223, %v184
    %v225 = vpop.permute.xlu0 %224
    %v227 = vsub.f32 %v186, %v195
    %v228 = vsub.f32 %v187, %v195
    %v229 = vsub.f32 %v188, %v195
    %v230 = vsub.f32 %v186, %v200
    %v231 = vsub.f32 %v187, %v200
    %v232 = vsub.f32 %v188, %v200
    %v233 = vsub.f32 %v186, %v205
    %v234 = vsub.f32 %v187, %v205
    %v235 = vsub.f32 %v188, %v205
    %v236 = vsub.f32 %v186, %v210
    %v237 = vsub.f32 %v187, %v210
    %v238 = vsub.f32 %v188, %v210
    %v239 = vsub.f32 %v186, %v215
    %v240 = vsub.f32 %v187, %v215
    %v241 = vsub.f32 %v188, %v215
    %v242 = vsub.f32 %v186, %v220
    %v243 = vsub.f32 %v187, %v220
    %v244 = vsub.f32 %v188, %v220
    %v245 = vsub.f32 %v186, %v225
    %v246 = vsub.f32 %v187, %v225
    %v247 = vsub.f32 %v188, %v225
    %v248 = vld [vmem:[%s2] sm:$0xff]
    %v249 = vld [vmem:[%s2 + $0x8] sm:$0xff]
    %v250 = vld [vmem:[%s2 + $0x10] sm:$0xff]
    %v251 = vld [vmem:[%s2 + $0x18] sm:$0xff]
    %v252 = vld [vmem:[%s2 + $0x20] sm:$0xff]
    %v253 = vld [vmem:[%s2 + $0x28] sm:$0xff]
    %v254 = vld [vmem:[%s2 + $0x30] sm:$0x3]
    %256 = vset.pattern.permute.xlu0 0
    %257 = vperm.xlu0 %256, %v248
    %v258 = vpop.permute.xlu0 %257
    %261 = vset.pattern.permute.xlu0 0
    %262 = vperm.xlu0 %261, %v249
    %v263 = vpop.permute.xlu0 %262
    %266 = vset.pattern.permute.xlu0 0
    %267 = vperm.xlu0 %266, %v250
    %v268 = vpop.permute.xlu0 %267
    %271 = vset.pattern.permute.xlu0 0
    %272 = vperm.xlu0 %271, %v251
    %v273 = vpop.permute.xlu0 %272
    %276 = vset.pattern.permute.xlu0 0
    %277 = vperm.xlu0 %276, %v252
    %v278 = vpop.permute.xlu0 %277
    %281 = vset.pattern.permute.xlu0 0
    %282 = vperm.xlu0 %281, %v253
    %v283 = vpop.permute.xlu0 %282
    %286 = vset.pattern.permute.xlu0 0
    %287 = vperm.xlu0 %286, %v254
    %v288 = vpop.permute.xlu0 %287
    %v290 = vmul.f32 %v258, %v227
    %v291 = vmul.f32 %v258, %v228
    %v292 = vmul.f32 %v258, %v229
    %v293 = vmul.f32 %v263, %v230
    %v294 = vmul.f32 %v263, %v231
    %v295 = vmul.f32 %v263, %v232
    %v296 = vmul.f32 %v268, %v233
    %v297 = vmul.f32 %v268, %v234
    %v298 = vmul.f32 %v268, %v235
    %v299 = vmul.f32 %v273, %v236
    %v300 = vmul.f32 %v273, %v237
    %v301 = vmul.f32 %v273, %v238
    %v302 = vmul.f32 %v278, %v239
    %v303 = vmul.f32 %v278, %v240
    %v304 = vmul.f32 %v278, %v241
    %v305 = vmul.f32 %v283, %v242
    %v306 = vmul.f32 %v283, %v243
    %v307 = vmul.f32 %v283, %v244
    %v308 = vmul.f32 %v288, %v245
    %v309 = vmul.f32 %v288, %v246
    %v310 = vmul.f32 %v288, %v247
    %v311 = vmul.f32 %v290, %v227
    %v312 = vmul.f32 %v291, %v228
    %v313 = vmul.f32 %v292, %v229
    %v314 = vmul.f32 %v293, %v230
    %v315 = vmul.f32 %v294, %v231
    %v316 = vmul.f32 %v295, %v232
    %v317 = vmul.f32 %v296, %v233
    %v318 = vmul.f32 %v297, %v234
    %v319 = vmul.f32 %v298, %v235
    %v320 = vmul.f32 %v299, %v236
    %v321 = vmul.f32 %v300, %v237
    %v322 = vmul.f32 %v301, %v238
    %v323 = vmul.f32 %v302, %v239
    %v324 = vmul.f32 %v303, %v240
    %v325 = vmul.f32 %v304, %v241
    %v326 = vmul.f32 %v305, %v242
    %v327 = vmul.f32 %v306, %v243
    %v328 = vmul.f32 %v307, %v244
    %v329 = vmul.f32 %v308, %v245
    %v330 = vmul.f32 %v309, %v246
    %v331 = vmul.f32 %v310, %v247
    %v332 = vmul.f32 %v311, 1.442695
    %v333 = vpow.pop %v332
    %v334 = vmul.f32 %v312, 1.442695
    %v335 = vpow.pop %v334
    %v336 = vmul.f32 %v313, 1.442695
    %v337 = vpow.pop %v336
    %v338 = vmul.f32 %v314, 1.442695
    %v339 = vpow.pop %v338
    %v340 = vmul.f32 %v315, 1.442695
    %v341 = vpow.pop %v340
    %v342 = vmul.f32 %v316, 1.442695
    %v343 = vpow.pop %v342
    %v344 = vmul.f32 %v317, 1.442695
    %v345 = vpow.pop %v344
    %v346 = vmul.f32 %v318, 1.442695
    %v347 = vpow.pop %v346
    %v348 = vmul.f32 %v319, 1.442695
    %v349 = vpow.pop %v348
    %v350 = vmul.f32 %v320, 1.442695
    %v351 = vpow.pop %v350
    %v352 = vmul.f32 %v321, 1.442695
    %v353 = vpow.pop %v352
    %v354 = vmul.f32 %v322, 1.442695
    %v355 = vpow.pop %v354
    %v356 = vmul.f32 %v323, 1.442695
    %v357 = vpow.pop %v356
    %v358 = vmul.f32 %v324, 1.442695
    %v359 = vpow.pop %v358
    %v360 = vmul.f32 %v325, 1.442695
    %v361 = vpow.pop %v360
    %v362 = vmul.f32 %v326, 1.442695
    %v363 = vpow.pop %v362
    %v364 = vmul.f32 %v327, 1.442695
    %v365 = vpow.pop %v364
    %v366 = vmul.f32 %v328, 1.442695
    %v367 = vpow.pop %v366
    %v368 = vmul.f32 %v329, 1.442695
    %v369 = vpow.pop %v368
    %v370 = vmul.f32 %v330, 1.442695
    %v371 = vpow.pop %v370
    %v372 = vmul.f32 %v331, 1.442695
    %v373 = vpow.pop %v372
    %v375 = vperm.slane %v174, 0
    %v376 = vperm.slane %v174, 1
    %v377 = vperm.slane %v174, 2
    %v381 = vmul.f32 %v375, %v333
    %v382 = vmul.f32 %v376, %v335
    %v383 = vmul.f32 %v377, %v337
    %v384 = vmul.f32 %v375, %v339
    %v385 = vmul.f32 %v376, %v341
    %v386 = vmul.f32 %v377, %v343
    %v387 = vmul.f32 %v375, %v345
    %v388 = vmul.f32 %v376, %v347
    %v389 = vmul.f32 %v377, %v349
    %v390 = vmul.f32 %v375, %v351
    %v391 = vmul.f32 %v376, %v353
    %v392 = vmul.f32 %v377, %v355
    %v393 = vmul.f32 %v375, %v357
    %v394 = vmul.f32 %v376, %v359
    %v395 = vmul.f32 %v377, %v361
    %v396 = vmul.f32 %v375, %v363
    %v397 = vmul.f32 %v376, %v365
    %v398 = vmul.f32 %v377, %v367
    %v399 = vmul.f32 %v375, %v369
    %v400 = vmul.f32 %v376, %v371
    %v401 = vmul.f32 %v377, %v373
    %402 = vst [vmem:[#allocation2] sm:$0xff] %v381
    %403 = vst [vmem:[#allocation2 + $0x8] sm:$0xff] %v382
    %404 = vst [vmem:[#allocation2 + $0x10] sm:$0xff] %v383
    %405 = vst [vmem:[#allocation2 + $0x18] sm:$0xff] %v384
    %406 = vst [vmem:[#allocation2 + $0x20] sm:$0xff] %v385
    %407 = vst [vmem:[#allocation2 + $0x28] sm:$0xff] %v386
    %408 = vst [vmem:[#allocation2 + $0x30] sm:$0xff] %v387
    %409 = vst [vmem:[#allocation2 + $0x38] sm:$0xff] %v388
    %410 = vst [vmem:[#allocation2 + $0x40] sm:$0xff] %v389
    %411 = vst [vmem:[#allocation2 + $0x48] sm:$0xff] %v390
    %412 = vst [vmem:[#allocation2 + $0x50] sm:$0xff] %v391
    %413 = vst [vmem:[#allocation2 + $0x58] sm:$0xff] %v392
    %414 = vst [vmem:[#allocation2 + $0x60] sm:$0xff] %v393
    %415 = vst [vmem:[#allocation2 + $0x68] sm:$0xff] %v394
    %416 = vst [vmem:[#allocation2 + $0x70] sm:$0xff] %v395
    %417 = vst [vmem:[#allocation2 + $0x78] sm:$0xff] %v396
    %418 = vst [vmem:[#allocation2 + $0x80] sm:$0xff] %v397
    %419 = vst [vmem:[#allocation2 + $0x88] sm:$0xff] %v398
    %420 = vst [vmem:[#allocation2 + $0x90] sm:$0x3] %v399
    %421 = vst [vmem:[#allocation2 + $0x98] sm:$0x3] %v400
    %422 = vst [vmem:[#allocation2 + $0xa0] sm:$0x3] %v401
    // Predicated region
    $region14: #{tpu_custom_call.1} parent=1 // pred_check
      _
    $region15: #{tpu_custom_call.1} parent=1 // pred_check_branch
      %424 = sbr.rel (0) target = $region17
    $region16: #{tpu_custom_call.1} parent=1 // pred_region
      %426 = vsyncadd [#allocation3], 0
      %s427 = sshll.u32 [#allocation2], 4
      %s428 = int_to_ptr.vmem [resolvable:$true] %s427
      %s429 = sshll.u32 %s3, 4
      %s430 = int_to_ptr.hbm [resolvable:$true] %s429
      %435 = dma.vmem_to_hbm [thread:$0]  %s428, 2688, %s430, [#allocation3], 384, 384, 24
    $region17: #{tpu_custom_call.1} parent=1 // pred_fallthru
      _
    // Predicated region
    $region18: #{tpu_custom_call.1} parent=1 // pred_check
      _
    $region19: #{tpu_custom_call.1} parent=1 // pred_check_branch
      %437 = sbr.rel (0) target = $region21
    $region20: #{tpu_custom_call.1} parent=1 // pred_region
      %439 = dma.done [#allocation3], 2688
    $region21: #{tpu_custom_call.1} parent=1 // pred_fallthru
      _
    %440 = vsyncpa [#allocation3], 1

</llo_original>
